<compile_context>
chip_gen: v5e
topology: v5e:2x2
jax: 0.10.0
libtpu: 0.0.40
codegen_flags: <defaults>
</compile_context>

<pallas_src>
import jax
import jax.numpy as jnp
from jax.experimental import pallas as pl
from jax.experimental.pallas import tpu as pltpu

# ---------------- shapes / config ----------------
B = 2           # batch
N = 16          # nodes (x is B x n x n  =>  in_dim == n)
IN_DIM = 16
H0 = 32         # hidden_initial
H = 32          # hidden
HF = 32         # hidden_final
LATENT = 8
DIM_MULT = 4    # PNA: mean, max, min, std
BN_EPS = 1e-5

LANES = 128
SLAB_ROWS = 168  # 128 (main block) + 32 (wf1 lane-padded) + 8 (bf1 row block)

# bias / affine row indices inside the (16, 32) vec block (slab rows 32:48, lanes 64:96)
_B0, _B1, _G0, _BE0, _BL0, _G1, _BE1, _BL1, _G2, _BE2, _BF0 = range(11)


def encoder_kernel(s_ref, out_ref):
    # --- unpack the slab (static slices; data stays in VMEM / vregs) ---
    V = s_ref[32:48, 64:96]                      # (16, 32) bias / gamma / beta rows
    b0,  b1  = V[_B0:_B0 + 1],  V[_B1:_B1 + 1]
    g0,  be0 = V[_G0:_G0 + 1],  V[_BE0:_BE0 + 1]
    bl0, g1, be1 = V[_BL0:_BL0 + 1], V[_G1:_G1 + 1], V[_BE1:_BE1 + 1]
    bl1, g2, be2 = V[_BL1:_BL1 + 1], V[_G2:_G2 + 1], V[_BE2:_BE2 + 1]
    bf0 = V[_BF0:_BF0 + 1]
    r_seg = s_ref[0:2, 96:128]                   # (B, 32) constant segment-mean LHS (1/N per node)

    def seg_moments(v):
        # Per-batch mean and E[x^2] as two tiny MXU dots (MXU is otherwise idle;
        # keeps the serial reductions off the XLU/VPU dependency chain).
        m  = jnp.dot(r_seg, v,     preferred_element_type=jnp.float32)   # (B, H)
        e2 = jnp.dot(r_seg, v * v, preferred_element_type=jnp.float32)   # (B, H)
        return m, e2

    def bn(v, gamma, beta):
        # BatchNorm1d (train-mode batch stats) over all B*N rows; segments have
        # equal counts, so batch stats = average of the two segment moments.
        sm, se = seg_moments(v)
        m   = 0.5 * (sm[0:1] + sm[1:2])
        ex2 = 0.5 * (se[0:1] + se[1:2])
        var = jnp.maximum(ex2 - m * m, 0.0)
        return (v - m) * jax.lax.rsqrt(var + BN_EPS) * gamma + beta

    # ---- initial MLP (Linear -> ReLU -> Linear), outer F.relu, BN ----
    x = s_ref[0:32, 32:64]                        # (B*N, 32) input, features padded 16 -> 32
    h = jnp.maximum(jnp.dot(x, s_ref[32:64, 32:64],
                            preferred_element_type=jnp.float32) + b0, 0.0)
    h = jnp.maximum(jnp.dot(h, s_ref[64:96, 32:64],
                            preferred_element_type=jnp.float32) + b1, 0.0)
    h = bn(h, g0, be0)

    # ---- encoder layers: x = bn(relu(Linear(x))) + x ----
    def enc(v, w, b, gamma, beta):
        o = jnp.maximum(jnp.dot(v, w, preferred_element_type=jnp.float32) + b, 0.0)
        return bn(o, gamma, beta) + v

    h = enc(h, s_ref[96:128, 32:64], bl0, g1, be1)
    h = enc(h, s_ref[0:32, 64:96],   bl1, g2, be2)

    # ---- PNA pooling (mean|max|min|std) over the node axis ----
    sm, se = seg_moments(h)                                   # (B, H) mean / E[x^2]
    sd = jnp.sqrt(jnp.maximum(se - sm * sm, 0.0) + 1e-12)
    maxs, mins = [], []
    for bi in range(B):                                       # B = 2, static unroll (XLU)
        hb = h[bi * N:(bi + 1) * N, :]
        maxs.append(jnp.max(hb, axis=0, keepdims=True))
        mins.append(jnp.min(hb, axis=0, keepdims=True))
    mx = jnp.concatenate(maxs, axis=0)                        # (B, H)
    mn = jnp.concatenate(mins, axis=0)                        # (B, H)

    # ---- final MLP: single K=128 matmul, then lane-padded (B, 128) output ----
    z = jnp.maximum(jnp.concatenate([sm, mx, mn, sd], axis=-1), 0.0)      # (B, 128)
    z = jnp.maximum(jnp.dot(z, s_ref[0:128, 0:32],
                            preferred_element_type=jnp.float32) + bf0, 0.0)
    out_ref[...] = (jnp.dot(z, s_ref[128:160, :],
                            preferred_element_type=jnp.float32)
                    + s_ref[160:161, :])                      # lanes 16:128 stay zero


def pack_slab(x, params):
    """Pack the input and every parameter into one lane-dense (168, 128) slab.

    Rows 0:128, lane blocks of 32:
      lanes   0: 32 -> wf0 (128, 32)                       (final-MLP layer 0, K=128)
      lanes  32: 64 -> [ x_pad | w0_pad | w1 | wl0 ]        (4 x (32, 32) row blocks)
      lanes  64: 96 -> [ wl1 | bias/affine rows (16, 32) | zeros ]
      lanes  96:128 -> [ r_seg (2, 32) segment-mean LHS | zeros ]
    Rows 128:160 -> wf1 lane-padded to (32, 128); row 160 -> bf1 lane-padded to 128.
    """
    (w0, b0, w1, b1, g0, be0,
     wl0, bl0, g1, be1, wl1, bl1, g2, be2,
     wf0, bf0, wf1, bf1) = params
    f32 = jnp.float32

    x_pad = jnp.zeros((B * N, H), f32).at[:, :IN_DIM].set(
        x.reshape(B * N, IN_DIM).astype(f32))
    w0_pad = jnp.zeros((H, H), f32).at[:IN_DIM, :].set(w0)

    c1 = jnp.concatenate([x_pad, w0_pad, w1, wl0], axis=0)                 # (128, 32)

    vec = jnp.concatenate([b0, b1, g0, be0, bl0, g1, be1, bl1, g2, be2,
                           bf0, jnp.zeros((5, H), f32)], axis=0)           # (16, 32)
    c2 = jnp.concatenate([wl1, vec, jnp.zeros((80, H), f32)], axis=0)      # (128, 32)

    r_seg = (jnp.arange(B)[:, None] ==
             (jnp.arange(B * N) // N)[None, :]).astype(f32) / N            # (2, 32)
    c3 = jnp.concatenate([r_seg, jnp.zeros((126, H), f32)], axis=0)        # (128, 32)

    main = jnp.concatenate([wf0, c1, c2, c3], axis=1)                      # (128, 128)

    wf1_rows = jnp.zeros((H, LANES), f32).at[:, :2 * LATENT].set(wf1)      # (32, 128)
    bf1_rows = jnp.zeros((8, LANES), f32).at[0, :2 * LATENT].set(bf1[0])   # (8, 128)
    return jnp.concatenate([main, wf1_rows, bf1_rows], axis=0)             # (168, 128)


def custom_encoder_pallas(x, params):
    slab = pack_slab(x, params)                   # single lane-dense input buffer
    vmem = pl.BlockSpec(memory_space=pltpu.MemorySpace.VMEM)
    z = pl.pallas_call(
        encoder_kernel,
        out_shape=jax.ShapeDtypeStruct((B, LANES), jnp.float32),
        in_specs=[vmem],
        out_specs=vmem,
        cost_estimate=pl.CostEstimate(
            flops=340_000, transcendentals=160,
            bytes_accessed=SLAB_ROWS * LANES * 4 + B * LANES * 4),
    )(slab)
    # Lanes 16:128 of z are structural zeros (wf1 / bf1 zero-padded there).
    return z[:, :LATENT], z[:, LATENT:2 * LATENT]


# -------- plain-JAX reference (same math) for a sanity check --------
def _batchnorm_ref(v, gamma, beta):
    mean = jnp.mean(v, axis=0, keepdims=True)
    var = jnp.mean((v - mean) ** 2, axis=0, keepdims=True)
    return (v - mean) * jax.lax.rsqrt(var + BN_EPS) * gamma + beta


def custom_encoder_ref(x, params):
    (w0, b0, w1, b1, g0, be0,
     wl0, bl0, g1, be1, wl1, bl1, g2, be2,
     wf0, bf0, wf1, bf1) = params
    xf = x.reshape(B * N, IN_DIM)
    h = jnp.maximum(xf @ w0 + b0, 0.0)
    h = jnp.maximum(h @ w1 + b1, 0.0)
    h = _batchnorm_ref(h, g0, be0)
    for w, b, g, be in ((wl0, bl0, g1, be1), (wl1, bl1, g2, be2)):
        out = _batchnorm_ref(jnp.maximum(h @ w + b, 0.0), g, be)
        h = out + h
    h3 = h.reshape(B, N, H)
    mean = jnp.mean(h3, axis=1)
    std = jnp.sqrt(jnp.mean((h3 - mean[:, None, :]) ** 2, axis=1) + 1e-12)
    z = jnp.concatenate([mean, jnp.max(h3, 1), jnp.min(h3, 1), std], axis=-1)
    z = jnp.maximum(z, 0.0)
    z = jnp.maximum(z @ wf0 + bf0, 0.0)
    z = z @ wf1 + bf1
    return z[:, :LATENT], z[:, LATENT:]


def init_params(key):
    def lin(k, fan_in, fan_out):
        kw, kb = jax.random.split(k)
        w = jax.random.normal(kw, (fan_in, fan_out), jnp.float32) / jnp.sqrt(fan_in)
        b = 0.02 * jax.random.normal(kb, (1, fan_out), jnp.float32)
        return w, b

    keys = jax.random.split(key, 8)
    w0, b0 = lin(keys[0], IN_DIM, H0)
    w1, b1 = lin(keys[1], H0, H)
    g0, be0 = jnp.ones((1, H), jnp.float32), jnp.zeros((1, H), jnp.float32)
    wl0, bl0 = lin(keys[2], H, H)
    g1, be1 = jnp.ones((1, H), jnp.float32), jnp.zeros((1, H), jnp.float32)
    wl1, bl1 = lin(keys[3], H, H)
    g2, be2 = jnp.ones((1, H), jnp.float32), jnp.zeros((1, H), jnp.float32)
    wf0, bf0 = lin(keys[4], DIM_MULT * H, HF)
    wf1, bf1 = lin(keys[5], HF, 2 * LATENT)
    return (w0, b0, w1, b1, g0, be0,
            wl0, bl0, g1, be1, wl1, bl1, g2, be2,
            wf0, bf0, wf1, bf1)


if __name__ == "__main__":
    key = jax.random.PRNGKey(0)
    kx, kp = jax.random.split(key)
    x = jax.random.normal(kx, (B, N, IN_DIM), jnp.float32)   # x: batch x n x n
    params = init_params(kp)

    mu, log_var = custom_encoder_pallas(x, params)
    jax.block_until_ready((mu, log_var))

    mu_ref, lv_ref = custom_encoder_ref(x, params)
    assert mu.shape == (B, LATENT) and log_var.shape == (B, LATENT)
    assert jnp.allclose(mu, mu_ref, rtol=1e-4, atol=1e-4)
    assert jnp.allclose(log_var, lv_ref, rtol=1e-4, atol=1e-4)

    # TODO(synk): Set2Set aggregator (LSTM-based) has no clean single-kernel Pallas
    # equivalent; a PNA-style (mean|max|min|std) aggregator is used instead.
    # TODO(synk): BatchNorm uses train-mode batch statistics (no running-stats /
    # momentum update), so eval()-mode PyTorch results would differ.
    print("KERNEL_OK")
</pallas_src>

<mosaic_0001>
module attributes {stable_mosaic.version = 11 : i64} {
  func.func @encoder_kernel(%arg0: memref<168x128xf32, #tpu.memory_space<vmem>>, %arg1: memref<2x128xf32, #tpu.memory_space<vmem>>) attributes {dimension_semantics = [], scalar_prefetch = 0 : i64, scratch_operands = 0 : i64, tpu.core_type = #tpu.core_type<tc>} {
    %c32 = arith.constant 32 : index
    %c64 = arith.constant 64 : index
    %0 = vector.load %arg0[%c32, %c64] : memref<168x128xf32, #tpu.memory_space<vmem>>, vector<16x32xf32>
    %1 = vector.extract_strided_slice %0 {offsets = [0, 0], sizes = [1, 32], strides = [1, 1]} : vector<16x32xf32> to vector<1x32xf32>
    %2 = vector.extract_strided_slice %0 {offsets = [1, 0], sizes = [1, 32], strides = [1, 1]} : vector<16x32xf32> to vector<1x32xf32>
    %3 = vector.extract_strided_slice %0 {offsets = [2, 0], sizes = [1, 32], strides = [1, 1]} : vector<16x32xf32> to vector<1x32xf32>
    %4 = vector.extract_strided_slice %0 {offsets = [3, 0], sizes = [1, 32], strides = [1, 1]} : vector<16x32xf32> to vector<1x32xf32>
    %5 = vector.extract_strided_slice %0 {offsets = [4, 0], sizes = [1, 32], strides = [1, 1]} : vector<16x32xf32> to vector<1x32xf32>
    %6 = vector.extract_strided_slice %0 {offsets = [5, 0], sizes = [1, 32], strides = [1, 1]} : vector<16x32xf32> to vector<1x32xf32>
    %7 = vector.extract_strided_slice %0 {offsets = [6, 0], sizes = [1, 32], strides = [1, 1]} : vector<16x32xf32> to vector<1x32xf32>
    %8 = vector.extract_strided_slice %0 {offsets = [7, 0], sizes = [1, 32], strides = [1, 1]} : vector<16x32xf32> to vector<1x32xf32>
    %9 = vector.extract_strided_slice %0 {offsets = [8, 0], sizes = [1, 32], strides = [1, 1]} : vector<16x32xf32> to vector<1x32xf32>
    %10 = vector.extract_strided_slice %0 {offsets = [9, 0], sizes = [1, 32], strides = [1, 1]} : vector<16x32xf32> to vector<1x32xf32>
    %11 = vector.extract_strided_slice %0 {offsets = [10, 0], sizes = [1, 32], strides = [1, 1]} : vector<16x32xf32> to vector<1x32xf32>
    %c0 = arith.constant 0 : index
    %c96 = arith.constant 96 : index
    %12 = vector.load %arg0[%c0, %c96] : memref<168x128xf32, #tpu.memory_space<vmem>>, vector<2x32xf32>
    %c0_0 = arith.constant 0 : index
    %c32_1 = arith.constant 32 : index
    %13 = vector.load %arg0[%c0_0, %c32_1] : memref<168x128xf32, #tpu.memory_space<vmem>>, vector<32x32xf32>
    %c32_2 = arith.constant 32 : index
    %c32_3 = arith.constant 32 : index
    %14 = vector.load %arg0[%c32_2, %c32_3] : memref<168x128xf32, #tpu.memory_space<vmem>>, vector<32x32xf32>
    %cst = arith.constant dense<0.000000e+00> : vector<32x32xf32>
    %15 = tpu.matmul %13, %14, %cst {dimension_numbers = #tpu.dot_dimension_numbers<[1], [0], [0], [1], [0, 0, 1, 1], [], []>} : vector<32x32xf32>, vector<32x32xf32>, vector<32x32xf32> -> vector<32x32xf32>
    %16 = vector.broadcast %1 : vector<1x32xf32> to vector<32x32xf32>
    %17 = arith.addf %15, %16 : vector<32x32xf32>
    %cst_4 = arith.constant 0.000000e+00 : f32
    %18 = vector.broadcast %cst_4 : f32 to vector<32x32xf32>
    %19 = arith.maximumf %17, %18 : vector<32x32xf32>
    %c64_5 = arith.constant 64 : index
    %c32_6 = arith.constant 32 : index
    %20 = vector.load %arg0[%c64_5, %c32_6] : memref<168x128xf32, #tpu.memory_space<vmem>>, vector<32x32xf32>
    %cst_7 = arith.constant dense<0.000000e+00> : vector<32x32xf32>
    %21 = tpu.matmul %19, %20, %cst_7 {dimension_numbers = #tpu.dot_dimension_numbers<[1], [0], [0], [1], [0, 0, 1, 1], [], []>} : vector<32x32xf32>, vector<32x32xf32>, vector<32x32xf32> -> vector<32x32xf32>
    %22 = vector.broadcast %2 : vector<1x32xf32> to vector<32x32xf32>
    %23 = arith.addf %21, %22 : vector<32x32xf32>
    %cst_8 = arith.constant 0.000000e+00 : f32
    %24 = vector.broadcast %cst_8 : f32 to vector<32x32xf32>
    %25 = arith.maximumf %23, %24 : vector<32x32xf32>
    %cst_9 = arith.constant dense<0.000000e+00> : vector<2x32xf32>
    %26 = tpu.matmul %12, %25, %cst_9 {dimension_numbers = #tpu.dot_dimension_numbers<[1], [0], [0], [1], [0, 0, 1, 1], [], []>} : vector<2x32xf32>, vector<32x32xf32>, vector<2x32xf32> -> vector<2x32xf32>
    %27 = arith.mulf %25, %25 : vector<32x32xf32>
    %cst_10 = arith.constant dense<0.000000e+00> : vector<2x32xf32>
    %28 = tpu.matmul %12, %27, %cst_10 {dimension_numbers = #tpu.dot_dimension_numbers<[1], [0], [0], [1], [0, 0, 1, 1], [], []>} : vector<2x32xf32>, vector<32x32xf32>, vector<2x32xf32> -> vector<2x32xf32>
    %29 = vector.extract_strided_slice %26 {offsets = [0, 0], sizes = [1, 32], strides = [1, 1]} : vector<2x32xf32> to vector<1x32xf32>
    %30 = vector.extract_strided_slice %26 {offsets = [1, 0], sizes = [1, 32], strides = [1, 1]} : vector<2x32xf32> to vector<1x32xf32>
    %31 = arith.addf %29, %30 : vector<1x32xf32>
    %cst_11 = arith.constant 5.000000e-01 : f32
    %32 = vector.broadcast %cst_11 : f32 to vector<1x32xf32>
    %33 = arith.mulf %32, %31 : vector<1x32xf32>
    %34 = vector.extract_strided_slice %28 {offsets = [0, 0], sizes = [1, 32], strides = [1, 1]} : vector<2x32xf32> to vector<1x32xf32>
    %35 = vector.extract_strided_slice %28 {offsets = [1, 0], sizes = [1, 32], strides = [1, 1]} : vector<2x32xf32> to vector<1x32xf32>
    %36 = arith.addf %34, %35 : vector<1x32xf32>
    %cst_12 = arith.constant 5.000000e-01 : f32
    %37 = vector.broadcast %cst_12 : f32 to vector<1x32xf32>
    %38 = arith.mulf %37, %36 : vector<1x32xf32>
    %39 = arith.mulf %33, %33 : vector<1x32xf32>
    %40 = arith.subf %38, %39 : vector<1x32xf32>
    %cst_13 = arith.constant 0.000000e+00 : f32
    %41 = vector.broadcast %cst_13 : f32 to vector<1x32xf32>
    %42 = arith.maximumf %40, %41 : vector<1x32xf32>
    %43 = vector.broadcast %33 : vector<1x32xf32> to vector<32x32xf32>
    %44 = arith.subf %25, %43 : vector<32x32xf32>
    %cst_14 = arith.constant 9.99999974E-6 : f32
    %45 = vector.broadcast %cst_14 : f32 to vector<1x32xf32>
    %46 = arith.addf %42, %45 : vector<1x32xf32>
    %47 = math.rsqrt %46 : vector<1x32xf32>
    %48 = vector.broadcast %47 : vector<1x32xf32> to vector<32x32xf32>
    %49 = arith.mulf %44, %48 : vector<32x32xf32>
    %50 = vector.broadcast %3 : vector<1x32xf32> to vector<32x32xf32>
    %51 = arith.mulf %49, %50 : vector<32x32xf32>
    %52 = vector.broadcast %4 : vector<1x32xf32> to vector<32x32xf32>
    %53 = arith.addf %51, %52 : vector<32x32xf32>
    %c96_15 = arith.constant 96 : index
    %c32_16 = arith.constant 32 : index
    %54 = vector.load %arg0[%c96_15, %c32_16] : memref<168x128xf32, #tpu.memory_space<vmem>>, vector<32x32xf32>
    %cst_17 = arith.constant dense<0.000000e+00> : vector<32x32xf32>
    %55 = tpu.matmul %53, %54, %cst_17 {dimension_numbers = #tpu.dot_dimension_numbers<[1], [0], [0], [1], [0, 0, 1, 1], [], []>} : vector<32x32xf32>, vector<32x32xf32>, vector<32x32xf32> -> vector<32x32xf32>
    %56 = vector.broadcast %5 : vector<1x32xf32> to vector<32x32xf32>
    %57 = arith.addf %55, %56 : vector<32x32xf32>
    %cst_18 = arith.constant 0.000000e+00 : f32
    %58 = vector.broadcast %cst_18 : f32 to vector<32x32xf32>
    %59 = arith.maximumf %57, %58 : vector<32x32xf32>
    %cst_19 = arith.constant dense<0.000000e+00> : vector<2x32xf32>
    %60 = tpu.matmul %12, %59, %cst_19 {dimension_numbers = #tpu.dot_dimension_numbers<[1], [0], [0], [1], [0, 0, 1, 1], [], []>} : vector<2x32xf32>, vector<32x32xf32>, vector<2x32xf32> -> vector<2x32xf32>
    %61 = arith.mulf %59, %59 : vector<32x32xf32>
    %cst_20 = arith.constant dense<0.000000e+00> : vector<2x32xf32>
    %62 = tpu.matmul %12, %61, %cst_20 {dimension_numbers = #tpu.dot_dimension_numbers<[1], [0], [0], [1], [0, 0, 1, 1], [], []>} : vector<2x32xf32>, vector<32x32xf32>, vector<2x32xf32> -> vector<2x32xf32>
    %63 = vector.extract_strided_slice %60 {offsets = [0, 0], sizes = [1, 32], strides = [1, 1]} : vector<2x32xf32> to vector<1x32xf32>
    %64 = vector.extract_strided_slice %60 {offsets = [1, 0], sizes = [1, 32], strides = [1, 1]} : vector<2x32xf32> to vector<1x32xf32>
    %65 = arith.addf %63, %64 : vector<1x32xf32>
    %cst_21 = arith.constant 5.000000e-01 : f32
    %66 = vector.broadcast %cst_21 : f32 to vector<1x32xf32>
    %67 = arith.mulf %66, %65 : vector<1x32xf32>
    %68 = vector.extract_strided_slice %62 {offsets = [0, 0], sizes = [1, 32], strides = [1, 1]} : vector<2x32xf32> to vector<1x32xf32>
    %69 = vector.extract_strided_slice %62 {offsets = [1, 0], sizes = [1, 32], strides = [1, 1]} : vector<2x32xf32> to vector<1x32xf32>
    %70 = arith.addf %68, %69 : vector<1x32xf32>
    %cst_22 = arith.constant 5.000000e-01 : f32
    %71 = vector.broadcast %cst_22 : f32 to vector<1x32xf32>
    %72 = arith.mulf %71, %70 : vector<1x32xf32>
    %73 = arith.mulf %67, %67 : vector<1x32xf32>
    %74 = arith.subf %72, %73 : vector<1x32xf32>
    %cst_23 = arith.constant 0.000000e+00 : f32
    %75 = vector.broadcast %cst_23 : f32 to vector<1x32xf32>
    %76 = arith.maximumf %74, %75 : vector<1x32xf32>
    %77 = vector.broadcast %67 : vector<1x32xf32> to vector<32x32xf32>
    %78 = arith.subf %59, %77 : vector<32x32xf32>
    %cst_24 = arith.constant 9.99999974E-6 : f32
    %79 = vector.broadcast %cst_24 : f32 to vector<1x32xf32>
    %80 = arith.addf %76, %79 : vector<1x32xf32>
    %81 = math.rsqrt %80 : vector<1x32xf32>
    %82 = vector.broadcast %81 : vector<1x32xf32> to vector<32x32xf32>
    %83 = arith.mulf %78, %82 : vector<32x32xf32>
    %84 = vector.broadcast %6 : vector<1x32xf32> to vector<32x32xf32>
    %85 = arith.mulf %83, %84 : vector<32x32xf32>
    %86 = vector.broadcast %7 : vector<1x32xf32> to vector<32x32xf32>
    %87 = arith.addf %85, %86 : vector<32x32xf32>
    %88 = arith.addf %87, %53 : vector<32x32xf32>
    %c0_25 = arith.constant 0 : index
    %c64_26 = arith.constant 64 : index
    %89 = vector.load %arg0[%c0_25, %c64_26] : memref<168x128xf32, #tpu.memory_space<vmem>>, vector<32x32xf32>
    %cst_27 = arith.constant dense<0.000000e+00> : vector<32x32xf32>
    %90 = tpu.matmul %88, %89, %cst_27 {dimension_numbers = #tpu.dot_dimension_numbers<[1], [0], [0], [1], [0, 0, 1, 1], [], []>} : vector<32x32xf32>, vector<32x32xf32>, vector<32x32xf32> -> vector<32x32xf32>
    %91 = vector.broadcast %8 : vector<1x32xf32> to vector<32x32xf32>
    %92 = arith.addf %90, %91 : vector<32x32xf32>
    %cst_28 = arith.constant 0.000000e+00 : f32
    %93 = vector.broadcast %cst_28 : f32 to vector<32x32xf32>
    %94 = arith.maximumf %92, %93 : vector<32x32xf32>
    %cst_29 = arith.constant dense<0.000000e+00> : vector<2x32xf32>
    %95 = tpu.matmul %12, %94, %cst_29 {dimension_numbers = #tpu.dot_dimension_numbers<[1], [0], [0], [1], [0, 0, 1, 1], [], []>} : vector<2x32xf32>, vector<32x32xf32>, vector<2x32xf32> -> vector<2x32xf32>
    %96 = arith.mulf %94, %94 : vector<32x32xf32>
    %cst_30 = arith.constant dense<0.000000e+00> : vector<2x32xf32>
    %97 = tpu.matmul %12, %96, %cst_30 {dimension_numbers = #tpu.dot_dimension_numbers<[1], [0], [0], [1], [0, 0, 1, 1], [], []>} : vector<2x32xf32>, vector<32x32xf32>, vector<2x32xf32> -> vector<2x32xf32>
    %98 = vector.extract_strided_slice %95 {offsets = [0, 0], sizes = [1, 32], strides = [1, 1]} : vector<2x32xf32> to vector<1x32xf32>
    %99 = vector.extract_strided_slice %95 {offsets = [1, 0], sizes = [1, 32], strides = [1, 1]} : vector<2x32xf32> to vector<1x32xf32>
    %100 = arith.addf %98, %99 : vector<1x32xf32>
    %cst_31 = arith.constant 5.000000e-01 : f32
    %101 = vector.broadcast %cst_31 : f32 to vector<1x32xf32>
    %102 = arith.mulf %101, %100 : vector<1x32xf32>
    %103 = vector.extract_strided_slice %97 {offsets = [0, 0], sizes = [1, 32], strides = [1, 1]} : vector<2x32xf32> to vector<1x32xf32>
    %104 = vector.extract_strided_slice %97 {offsets = [1, 0], sizes = [1, 32], strides = [1, 1]} : vector<2x32xf32> to vector<1x32xf32>
    %105 = arith.addf %103, %104 : vector<1x32xf32>
    %cst_32 = arith.constant 5.000000e-01 : f32
    %106 = vector.broadcast %cst_32 : f32 to vector<1x32xf32>
    %107 = arith.mulf %106, %105 : vector<1x32xf32>
    %108 = arith.mulf %102, %102 : vector<1x32xf32>
    %109 = arith.subf %107, %108 : vector<1x32xf32>
    %cst_33 = arith.constant 0.000000e+00 : f32
    %110 = vector.broadcast %cst_33 : f32 to vector<1x32xf32>
    %111 = arith.maximumf %109, %110 : vector<1x32xf32>
    %112 = vector.broadcast %102 : vector<1x32xf32> to vector<32x32xf32>
    %113 = arith.subf %94, %112 : vector<32x32xf32>
    %cst_34 = arith.constant 9.99999974E-6 : f32
    %114 = vector.broadcast %cst_34 : f32 to vector<1x32xf32>
    %115 = arith.addf %111, %114 : vector<1x32xf32>
    %116 = math.rsqrt %115 : vector<1x32xf32>
    %117 = vector.broadcast %116 : vector<1x32xf32> to vector<32x32xf32>
    %118 = arith.mulf %113, %117 : vector<32x32xf32>
    %119 = vector.broadcast %9 : vector<1x32xf32> to vector<32x32xf32>
    %120 = arith.mulf %118, %119 : vector<32x32xf32>
    %121 = vector.broadcast %10 : vector<1x32xf32> to vector<32x32xf32>
    %122 = arith.addf %120, %121 : vector<32x32xf32>
    %123 = arith.addf %122, %88 : vector<32x32xf32>
    %cst_35 = arith.constant dense<0.000000e+00> : vector<2x32xf32>
    %124 = tpu.matmul %12, %123, %cst_35 {dimension_numbers = #tpu.dot_dimension_numbers<[1], [0], [0], [1], [0, 0, 1, 1], [], []>} : vector<2x32xf32>, vector<32x32xf32>, vector<2x32xf32> -> vector<2x32xf32>
    %125 = arith.mulf %123, %123 : vector<32x32xf32>
    %cst_36 = arith.constant dense<0.000000e+00> : vector<2x32xf32>
    %126 = tpu.matmul %12, %125, %cst_36 {dimension_numbers = #tpu.dot_dimension_numbers<[1], [0], [0], [1], [0, 0, 1, 1], [], []>} : vector<2x32xf32>, vector<32x32xf32>, vector<2x32xf32> -> vector<2x32xf32>
    %127 = arith.mulf %124, %124 : vector<2x32xf32>
    %128 = arith.subf %126, %127 : vector<2x32xf32>
    %cst_37 = arith.constant 0.000000e+00 : f32
    %129 = vector.broadcast %cst_37 : f32 to vector<2x32xf32>
    %130 = arith.maximumf %128, %129 : vector<2x32xf32>
    %cst_38 = arith.constant 9.99999996E-13 : f32
    %131 = vector.broadcast %cst_38 : f32 to vector<2x32xf32>
    %132 = arith.addf %130, %131 : vector<2x32xf32>
    %133 = math.sqrt %132 : vector<2x32xf32>
    %134 = vector.extract_strided_slice %123 {offsets = [0, 0], sizes = [16, 32], strides = [1, 1]} : vector<32x32xf32> to vector<16x32xf32>
    %cst_39 = arith.constant dense<0xFF800000> : vector<32xf32>
    %135 = vector.multi_reduction <maximumf>, %134, %cst_39 [0] : vector<16x32xf32> to vector<32xf32>
    %136 = vector.shape_cast %135 : vector<32xf32> to vector<1x32xf32>
    %cst_40 = arith.constant dense<0x7F800000> : vector<32xf32>
    %137 = vector.multi_reduction <minimumf>, %134, %cst_40 [0] : vector<16x32xf32> to vector<32xf32>
    %138 = vector.shape_cast %137 : vector<32xf32> to vector<1x32xf32>
    %139 = vector.extract_strided_slice %123 {offsets = [16, 0], sizes = [16, 32], strides = [1, 1]} : vector<32x32xf32> to vector<16x32xf32>
    %cst_41 = arith.constant dense<0xFF800000> : vector<32xf32>
    %140 = vector.multi_reduction <maximumf>, %139, %cst_41 [0] : vector<16x32xf32> to vector<32xf32>
    %141 = vector.shape_cast %140 : vector<32xf32> to vector<1x32xf32>
    %cst_42 = arith.constant dense<0x7F800000> : vector<32xf32>
    %142 = vector.multi_reduction <minimumf>, %139, %cst_42 [0] : vector<16x32xf32> to vector<32xf32>
    %143 = vector.shape_cast %142 : vector<32xf32> to vector<1x32xf32>
    %144 = tpu.concatenate %136, %141 in 0 : vector<1x32xf32>, vector<1x32xf32> -> vector<2x32xf32>
    %145 = tpu.concatenate %138, %143 in 0 : vector<1x32xf32>, vector<1x32xf32> -> vector<2x32xf32>
    %146 = tpu.concatenate %124, %144, %145, %133 in 1 : vector<2x32xf32>, vector<2x32xf32>, vector<2x32xf32>, vector<2x32xf32> -> vector<2x128xf32>
    %cst_43 = arith.constant 0.000000e+00 : f32
    %147 = vector.broadcast %cst_43 : f32 to vector<2x128xf32>
    %148 = arith.maximumf %146, %147 : vector<2x128xf32>
    %c0_44 = arith.constant 0 : index
    %c0_45 = arith.constant 0 : index
    %149 = vector.load %arg0[%c0_44, %c0_45] : memref<168x128xf32, #tpu.memory_space<vmem>>, vector<128x32xf32>
    %cst_46 = arith.constant dense<0.000000e+00> : vector<2x32xf32>
    %150 = tpu.matmul %148, %149, %cst_46 {dimension_numbers = #tpu.dot_dimension_numbers<[1], [0], [0], [1], [0, 0, 1, 1], [], []>} : vector<2x128xf32>, vector<128x32xf32>, vector<2x32xf32> -> vector<2x32xf32>
    %151 = vector.broadcast %11 : vector<1x32xf32> to vector<2x32xf32>
    %152 = arith.addf %150, %151 : vector<2x32xf32>
    %cst_47 = arith.constant 0.000000e+00 : f32
    %153 = vector.broadcast %cst_47 : f32 to vector<2x32xf32>
    %154 = arith.maximumf %152, %153 : vector<2x32xf32>
    %c128 = arith.constant 128 : index
    %c0_48 = arith.constant 0 : index
    %155 = vector.load %arg0[%c128, %c0_48] : memref<168x128xf32, #tpu.memory_space<vmem>>, vector<32x128xf32>
    %cst_49 = arith.constant dense<0.000000e+00> : vector<2x128xf32>
    %156 = tpu.matmul %154, %155, %cst_49 {dimension_numbers = #tpu.dot_dimension_numbers<[1], [0], [0], [1], [0, 0, 1, 1], [], []>} : vector<2x32xf32>, vector<32x128xf32>, vector<2x128xf32> -> vector<2x128xf32>
    %c160 = arith.constant 160 : index
    %c0_50 = arith.constant 0 : index
    %157 = vector.load %arg0[%c160, %c0_50] : memref<168x128xf32, #tpu.memory_space<vmem>>, vector<1x128xf32>
    %158 = vector.broadcast %157 : vector<1x128xf32> to vector<2x128xf32>
    %159 = arith.addf %156, %158 : vector<2x128xf32>
    %c0_51 = arith.constant 0 : index
    %c0_52 = arith.constant 0 : index
    %160 = vector.load %arg1[%c0_51, %c0_52] : memref<2x128xf32, #tpu.memory_space<vmem>>, vector<2x128xf32>
    tpu.vector_store %arg1[%c0_51, %c0_52], %159 {strides = array<i32>} : memref<2x128xf32, #tpu.memory_space<vmem>>, vector<2x128xf32>,
    return
  }
}

</mosaic_0001>

<llo_original>
// kernel: tpu_custom_call.1
$region0: #{tpu_custom_call.1}
  #allocation0 [shape = 'u32[]', space=smem, size = 0x4, offset = 0x4, fixed_abs, tag = 'smem constant byte address 0x4 - core index']
  #allocation1 [shape = 'u32[72,128]{1,0:T(1,128)}', space=vmem, size = 0x9000, scoped, tag = 'internal scratch']
  %s0 = inlined_call_operand.hbm [shape: f32[168,128], index: 0, kind: input, shape index: {}]
  %s1 = inlined_call_operand.hbm [shape: f32[2,128], index: 1, kind: output, shape index: {}]
  %s2 = sld [smem:[#allocation0]]
  $region18: #{tpu_custom_call.1} parent=0
    _
  %s4 = ssub.s32 1, %s2
  %s5 = scalar_select 0, %s4, %s2
  $region1: #{tpu_custom_call.1} parent=0
    #allocation2 [shape = 'u8[86016]{0}', space=vmem, size = 0x15000, scoped, tag = 'input window, operand 0, single buffered']
    #allocation3 [shape = 's32[1]{0}', space=sflag, size = 0x4, scoped, tag = 'scoped memory for tpu_custom_call.1']
    #allocation4 [shape = 's32[1]{0}', space=sflag, size = 0x4, scoped, tag = 'scoped memory for tpu_custom_call.1']
    #allocation5 [shape = 'u8[1024]{0}', space=vmem, size = 0x400, scoped, tag = 'output window, operand 0, single buffered']
    %6 = vsyncpa [#allocation3], 0
    %7 = vsyncpa [#allocation4], 0
    // Predicated region
    $region2: #{tpu_custom_call.1} parent=1 // pred_check
      _
    $region3: #{tpu_custom_call.1} parent=1 // pred_check_branch
      %9 = sbr.rel (0) target = $region5
    $region4: #{tpu_custom_call.1} parent=1 // pred_region
      %11 = vsyncadd [#allocation3], 0
      %s12 = sshll.u32 %s0, 4
      %s13 = int_to_ptr.hbm [resolvable:$true] %s12
      %s14 = sshll.u32 [#allocation2], 4
      %s15 = int_to_ptr.vmem [resolvable:$true] %s14
      %20 = dma.hbm_to_vmem [thread:$0]  %s13, 2688, %s15, [#allocation3], 128, 128, 8
    $region5: #{tpu_custom_call.1} parent=1 // pred_fallthru
      _
    // Predicated region
    $region6: #{tpu_custom_call.1} parent=1 // pred_check
      _
    $region7: #{tpu_custom_call.1} parent=1 // pred_check_branch
      %22 = sbr.rel (0) target = $region9
    $region8: #{tpu_custom_call.1} parent=1 // pred_region
      %24 = dma.done [#allocation3], 2688
    $region9: #{tpu_custom_call.1} parent=1 // pred_fallthru
      _
    %v25 = vld [vmem:[#allocation2 + $0x20] sm:$0xff]
    %v26 = vld [vmem:[#allocation2 + $0x28] sm:$0xff]
    %v27 = vld [vmem:[#allocation2] sm:$0x3]
    %v28 = vld [vmem:[#allocation2] sm:$0xff]
    %v29 = vld [vmem:[#allocation2 + $0x8] sm:$0xff]
    %v30 = vld [vmem:[#allocation2 + $0x10] sm:$0xff]
    %v31 = vld [vmem:[#allocation2 + $0x18] sm:$0xff]
    %v32 = vld [vmem:[#allocation2 + $0x30] sm:$0xff]
    %v33 = vld [vmem:[#allocation2 + $0x38] sm:$0xff]
    %v34 = vperm.slane %v25, 0
    %39 = vrot.lane.b32.xlu0 %v28, 96
    %v40 = vpop.permute.xlu0 %39
    %41 = vrot.lane.b32.xlu0 %v29, 96
    %v42 = vpop.permute.xlu0 %41
    %43 = vrot.lane.b32.xlu0 %v30, 96
    %v44 = vpop.permute.xlu0 %43
    %45 = vrot.lane.b32.xlu0 %v31, 96
    %v46 = vpop.permute.xlu0 %45
    %51 = vrot.lane.b32.xlu0 %v25, 96
    %v52 = vpop.permute.xlu0 %51
    %53 = vrot.lane.b32.xlu0 %v26, 96
    %v54 = vpop.permute.xlu0 %53
    %55 = vrot.lane.b32.xlu0 %v32, 96
    %v56 = vpop.permute.xlu0 %55
    %57 = vrot.lane.b32.xlu0 %v33, 96
    %v58 = vpop.permute.xlu0 %57
    %64 = vrot.lane.b32.xlu0 %v34, 64
    %v65 = vpop.permute.xlu0 %64
    %vm67 = vcmask 261120
    %v68 = vsel %vm67, %v40, 0
    %v70 = vsel %vm67, %v42, 0
    %v72 = vsel %vm67, %v44, 0
    %v74 = vsel %vm67, %v46, 0
    %76 = vmatpush.msra.mxu0 0.0
    %77 = vmatpush.msra.mxu0 0.0
    %78 = vmatpush.msra.mxu0 0.0
    %79 = vmatpush.msra.mxu0 0.0
    %80 = vmatpush.msra.mxu0 0.0
    %81 = vmatpush.msra.mxu0 0.0
    %82 = vmatpush.msra.mxu0 0.0
    %83 = vmatpush.msra.mxu0 0.0
    %84 = vmatpush.msra.mxu0 0.0
    %85 = vmatpush.msra.mxu0 0.0
    %86 = vmatpush.msra.mxu0 0.0
    %87 = vmatpush.msra.mxu0 0.0
    %88 = vmatpush.msra.mxu0 %v58
    %89 = vmatpush.msra.mxu0 %v56
    %90 = vmatpush.msra.mxu0 %v54
    %91 = vmatpush.msra.mxu0 %v52
    %92 = vmatmul.f32.gmra.mxu0 %v68
    %v93 = vpop.f32.mrf.mxu0
    %v94 = vadd.f32 %v65, %v93
    %95 = vmatmul.f32.gmra.mxu0 %v70
    %v96 = vpop.f32.mrf.mxu0
    %v97 = vadd.f32 %v65, %v96
    %98 = vmatmul.f32.gmra.mxu0 %v72
    %v99 = vpop.f32.mrf.mxu0
    %v100 = vadd.f32 %v65, %v99
    %101 = vmatmul.f32.gmra.mxu0 %v74
    %v102 = vpop.f32.mrf.mxu0
    %v103 = vadd.f32 %v65, %v102
    %104 = vdwg.mxu0
    %v105 = vmax.f32 %v94, 0.0
    %v106 = vmax.f32 %v97, 0.0
    %v107 = vmax.f32 %v100, 0.0
    %v108 = vmax.f32 %v103, 0.0
    %v109 = vld [vmem:[#allocation2 + $0x40] sm:$0xff]
    %v110 = vld [vmem:[#allocation2 + $0x48] sm:$0xff]
    %v111 = vld [vmem:[#allocation2 + $0x50] sm:$0xff]
    %v112 = vld [vmem:[#allocation2 + $0x58] sm:$0xff]
    %v113 = vperm.slane %v25, 1
    %118 = vrot.lane.b32.xlu0 %v109, 96
    %v119 = vpop.permute.xlu0 %118
    %120 = vrot.lane.b32.xlu0 %v110, 96
    %v121 = vpop.permute.xlu0 %120
    %122 = vrot.lane.b32.xlu0 %v111, 96
    %v123 = vpop.permute.xlu0 %122
    %124 = vrot.lane.b32.xlu0 %v112, 96
    %v125 = vpop.permute.xlu0 %124
    %131 = vrot.lane.b32.xlu0 %v113, 64
    %v132 = vpop.permute.xlu0 %131
    %v135 = vsel %vm67, %v105, 0
    %v138 = vsel %vm67, %v106, 0
    %v141 = vsel %vm67, %v107, 0
    %v144 = vsel %vm67, %v108, 0
    %146 = vmatpush.msra.mxu0 0.0
    %147 = vmatpush.msra.mxu0 0.0
    %148 = vmatpush.msra.mxu0 0.0
    %149 = vmatpush.msra.mxu0 0.0
    %150 = vmatpush.msra.mxu0 0.0
    %151 = vmatpush.msra.mxu0 0.0
    %152 = vmatpush.msra.mxu0 0.0
    %153 = vmatpush.msra.mxu0 0.0
    %154 = vmatpush.msra.mxu0 0.0
    %155 = vmatpush.msra.mxu0 0.0
    %156 = vmatpush.msra.mxu0 0.0
    %157 = vmatpush.msra.mxu0 0.0
    %158 = vmatpush.msra.mxu0 %v125
    %159 = vmatpush.msra.mxu0 %v123
    %160 = vmatpush.msra.mxu0 %v121
    %161 = vmatpush.msra.mxu0 %v119
    %162 = vmatmul.f32.gmra.mxu0 %v135
    %v163 = vpop.f32.mrf.mxu0
    %v164 = vadd.f32 %v132, %v163
    %165 = vmatmul.f32.gmra.mxu0 %v138
    %v166 = vpop.f32.mrf.mxu0
    %v167 = vadd.f32 %v132, %v166
    %168 = vmatmul.f32.gmra.mxu0 %v141
    %v169 = vpop.f32.mrf.mxu0
    %v170 = vadd.f32 %v132, %v169
    %171 = vmatmul.f32.gmra.mxu0 %v144
    %v172 = vpop.f32.mrf.mxu0
    %v173 = vadd.f32 %v132, %v172
    %174 = vdwg.mxu0
    %v175 = vmax.f32 %v164, 0.0
    %v176 = vmax.f32 %v167, 0.0
    %v177 = vmax.f32 %v170, 0.0
    %v178 = vmax.f32 %v173, 0.0
    %180 = vrot.lane.b32.xlu0 %v27, 32
    %v181 = vpop.permute.xlu0 %180
    %v182 = vsel %vm67, %v181, 0
    %184 = vmatpush.msra.mxu0 0.0
    %185 = vmatpush.msra.mxu0 0.0
    %186 = vmatpush.msra.mxu0 0.0
    %187 = vmatpush.msra.mxu0 0.0
    %188 = vmatpush.msra.mxu0 0.0
    %189 = vmatpush.msra.mxu0 0.0
    %190 = vmatpush.msra.mxu0 0.0
    %191 = vmatpush.msra.mxu0 0.0
    %192 = vmatpush.msra.mxu0 0.0
    %193 = vmatpush.msra.mxu0 0.0
    %194 = vmatpush.msra.mxu0 0.0
    %195 = vmatpush.msra.mxu0 0.0
    %196 = vmatpush.msra.mxu0 %v178
    %197 = vmatpush.msra.mxu0 %v177
    %198 = vmatpush.msra.mxu0 %v176
    %199 = vmatpush.msra.mxu0 %v175
    %200 = vmatmul.f32.gmra.mxu0 %v182
    %v201 = vpop.f32.mrf.mxu0
    %v202 = vadd.f32 0.0, %v201
    %203 = vdwg.mxu0
    %v204 = vmul.f32 %v175, %v175
    %v205 = vmul.f32 %v176, %v176
    %v206 = vmul.f32 %v177, %v177
    %v207 = vmul.f32 %v178, %v178
    %208 = vmatpush.msra.mxu0 0.0
    %209 = vmatpush.msra.mxu0 0.0
    %210 = vmatpush.msra.mxu0 0.0
    %211 = vmatpush.msra.mxu0 0.0
    %212 = vmatpush.msra.mxu0 0.0
    %213 = vmatpush.msra.mxu0 0.0
    %214 = vmatpush.msra.mxu0 0.0
    %215 = vmatpush.msra.mxu0 0.0
    %216 = vmatpush.msra.mxu0 0.0
    %217 = vmatpush.msra.mxu0 0.0
    %218 = vmatpush.msra.mxu0 0.0
    %219 = vmatpush.msra.mxu0 0.0
    %220 = vmatpush.msra.mxu0 %v207
    %221 = vmatpush.msra.mxu0 %v206
    %222 = vmatpush.msra.mxu0 %v205
    %223 = vmatpush.msra.mxu0 %v204
    %224 = vmatmul.f32.gmra.mxu0 %v182
    %v225 = vpop.f32.mrf.mxu0
    %v226 = vadd.f32 0.0, %v225
    %227 = vdwg.mxu0
    %v229 = vrot.slane %v202, 1
    %v231 = vadd.f32 %v202, %v229
    %v232 = vmul.f32 %v231, 0.5
    %v234 = vrot.slane %v226, 1
    %v236 = vadd.f32 %v226, %v234
    %v237 = vmul.f32 %v236, 0.5
    %v238 = vmul.f32 %v232, %v232
    %v239 = vsub.f32 %v237, %v238
    %v240 = vmax.f32 %v239, 0.0
    %v241 = vperm.slane %v232, 0
    %v242 = vsub.f32 %v175, %v241
    %v243 = vsub.f32 %v176, %v241
    %v244 = vsub.f32 %v177, %v241
    %v245 = vsub.f32 %v178, %v241
    %v246 = vadd.f32 %v240, 1e-05
    %v247 = vrsqrt.pop %v246
    %v248 = vmul.f32 %v247, %v246
    %v249 = vmul.f32 %v248, %v247
    %v250 = vmul.f32 0.5, %v249
    %v251 = vsub.f32 1.5, %v250
    %v252 = vmul.f32 %v247, %v251
    %vm253 = vweird.f32 %v246
    %vm254 = vweird.f32 %v247
    %vm255 = vmor %vm253, %vm254
    %v256 = vsel %vm255, %v247, %v252
    %v257 = vperm.slane %v256, 0
    %v258 = vmul.f32 %v242, %v257
    %v259 = vmul.f32 %v243, %v257
    %v260 = vmul.f32 %v244, %v257
    %v261 = vmul.f32 %v245, %v257
    %v262 = vperm.slane %v25, 2
    %264 = vrot.lane.b32.xlu0 %v262, 64
    %v265 = vpop.permute.xlu0 %264
    %v267 = vmul.f32 %v258, %v265
    %v268 = vmul.f32 %v259, %v265
    %v269 = vmul.f32 %v260, %v265
    %v270 = vmul.f32 %v261, %v265
    %v271 = vperm.slane %v25, 3
    %273 = vrot.lane.b32.xlu0 %v271, 64
    %v274 = vpop.permute.xlu0 %273
    %v276 = vadd.f32 %v267, %v274
    %v277 = vadd.f32 %v268, %v274
    %v278 = vadd.f32 %v269, %v274
    %v279 = vadd.f32 %v270, %v274
    %v280 = vld [vmem:[#allocation2 + $0x60] sm:$0xff]
    %v281 = vld [vmem:[#allocation2 + $0x68] sm:$0xff]
    %v282 = vld [vmem:[#allocation2 + $0x70] sm:$0xff]
    %v283 = vld [vmem:[#allocation2 + $0x78] sm:$0xff]
    %v284 = vperm.slane %v25, 4
    %289 = vrot.lane.b32.xlu0 %v280, 96
    %v290 = vpop.permute.xlu0 %289
    %291 = vrot.lane.b32.xlu0 %v281, 96
    %v292 = vpop.permute.xlu0 %291
    %293 = vrot.lane.b32.xlu0 %v282, 96
    %v294 = vpop.permute.xlu0 %293
    %295 = vrot.lane.b32.xlu0 %v283, 96
    %v296 = vpop.permute.xlu0 %295
    %302 = vrot.lane.b32.xlu0 %v284, 64
    %v303 = vpop.permute.xlu0 %302
    %v306 = vsel %vm67, %v276, 0
    %v309 = vsel %vm67, %v277, 0
    %v312 = vsel %vm67, %v278, 0
    %v315 = vsel %vm67, %v279, 0
    %317 = vmatpush.msra.mxu0 0.0
    %318 = vmatpush.msra.mxu0 0.0
    %319 = vmatpush.msra.mxu0 0.0
    %320 = vmatpush.msra.mxu0 0.0
    %321 = vmatpush.msra.mxu0 0.0
    %322 = vmatpush.msra.mxu0 0.0
    %323 = vmatpush.msra.mxu0 0.0
    %324 = vmatpush.msra.mxu0 0.0
    %325 = vmatpush.msra.mxu0 0.0
    %326 = vmatpush.msra.mxu0 0.0
    %327 = vmatpush.msra.mxu0 0.0
    %328 = vmatpush.msra.mxu0 0.0
    %329 = vmatpush.msra.mxu0 %v296
    %330 = vmatpush.msra.mxu0 %v294
    %331 = vmatpush.msra.mxu0 %v292
    %332 = vmatpush.msra.mxu0 %v290
    %333 = vmatmul.f32.gmra.mxu0 %v306
    %v334 = vpop.f32.mrf.mxu0
    %v335 = vadd.f32 %v303, %v334
    %336 = vmatmul.f32.gmra.mxu0 %v309
    %v337 = vpop.f32.mrf.mxu0
    %v338 = vadd.f32 %v303, %v337
    %339 = vmatmul.f32.gmra.mxu0 %v312
    %v340 = vpop.f32.mrf.mxu0
    %v341 = vadd.f32 %v303, %v340
    %342 = vmatmul.f32.gmra.mxu0 %v315
    %v343 = vpop.f32.mrf.mxu0
    %v344 = vadd.f32 %v303, %v343
    %345 = vdwg.mxu0
    %v346 = vmax.f32 %v335, 0.0
    %v347 = vmax.f32 %v338, 0.0
    %v348 = vmax.f32 %v341, 0.0
    %v349 = vmax.f32 %v344, 0.0
    %350 = vmatpush.msra.mxu0 0.0
    %351 = vmatpush.msra.mxu0 0.0
    %352 = vmatpush.msra.mxu0 0.0
    %353 = vmatpush.msra.mxu0 0.0
    %354 = vmatpush.msra.mxu0 0.0
    %355 = vmatpush.msra.mxu0 0.0
    %356 = vmatpush.msra.mxu0 0.0
    %357 = vmatpush.msra.mxu0 0.0
    %358 = vmatpush.msra.mxu0 0.0
    %359 = vmatpush.msra.mxu0 0.0
    %360 = vmatpush.msra.mxu0 0.0
    %361 = vmatpush.msra.mxu0 0.0
    %362 = vmatpush.msra.mxu0 %v349
    %363 = vmatpush.msra.mxu0 %v348
    %364 = vmatpush.msra.mxu0 %v347
    %365 = vmatpush.msra.mxu0 %v346
    %366 = vmatmul.f32.gmra.mxu0 %v182
    %v367 = vpop.f32.mrf.mxu0
    %v368 = vadd.f32 0.0, %v367
    %369 = vdwg.mxu0
    %v370 = vmul.f32 %v346, %v346
    %v371 = vmul.f32 %v347, %v347
    %v372 = vmul.f32 %v348, %v348
    %v373 = vmul.f32 %v349, %v349
    %374 = vmatpush.msra.mxu0 0.0
    %375 = vmatpush.msra.mxu0 0.0
    %376 = vmatpush.msra.mxu0 0.0
    %377 = vmatpush.msra.mxu0 0.0
    %378 = vmatpush.msra.mxu0 0.0
    %379 = vmatpush.msra.mxu0 0.0
    %380 = vmatpush.msra.mxu0 0.0
    %381 = vmatpush.msra.mxu0 0.0
    %382 = vmatpush.msra.mxu0 0.0
    %383 = vmatpush.msra.mxu0 0.0
    %384 = vmatpush.msra.mxu0 0.0
    %385 = vmatpush.msra.mxu0 0.0
    %386 = vmatpush.msra.mxu0 %v373
    %387 = vmatpush.msra.mxu0 %v372
    %388 = vmatpush.msra.mxu0 %v371
    %389 = vmatpush.msra.mxu0 %v370
    %390 = vmatmul.f32.gmra.mxu0 %v182
    %v391 = vpop.f32.mrf.mxu0
    %v392 = vadd.f32 0.0, %v391
    %393 = vdwg.mxu0
    %v395 = vrot.slane %v368, 1
    %v397 = vadd.f32 %v368, %v395
    %v398 = vmul.f32 %v397, 0.5
    %v400 = vrot.slane %v392, 1
    %v402 = vadd.f32 %v392, %v400
    %v403 = vmul.f32 %v402, 0.5
    %v404 = vmul.f32 %v398, %v398
    %v405 = vsub.f32 %v403, %v404
    %v406 = vmax.f32 %v405, 0.0
    %v407 = vperm.slane %v398, 0
    %v408 = vsub.f32 %v346, %v407
    %v409 = vsub.f32 %v347, %v407
    %v410 = vsub.f32 %v348, %v407
    %v411 = vsub.f32 %v349, %v407
    %v412 = vadd.f32 %v406, 1e-05
    %v413 = vrsqrt.pop %v412
    %v414 = vmul.f32 %v413, %v412
    %v415 = vmul.f32 %v414, %v413
    %v416 = vmul.f32 0.5, %v415
    %v417 = vsub.f32 1.5, %v416
    %v418 = vmul.f32 %v413, %v417
    %vm419 = vweird.f32 %v412
    %vm420 = vweird.f32 %v413
    %vm421 = vmor %vm419, %vm420
    %v422 = vsel %vm421, %v413, %v418
    %v423 = vperm.slane %v422, 0
    %v424 = vmul.f32 %v408, %v423
    %v425 = vmul.f32 %v409, %v423
    %v426 = vmul.f32 %v410, %v423
    %v427 = vmul.f32 %v411, %v423
    %v428 = vperm.slane %v25, 5
    %430 = vrot.lane.b32.xlu0 %v428, 64
    %v431 = vpop.permute.xlu0 %430
    %v433 = vmul.f32 %v424, %v431
    %v434 = vmul.f32 %v425, %v431
    %v435 = vmul.f32 %v426, %v431
    %v436 = vmul.f32 %v427, %v431
    %v437 = vperm.slane %v25, 6
    %439 = vrot.lane.b32.xlu0 %v437, 64
    %v440 = vpop.permute.xlu0 %439
    %v442 = vadd.f32 %v433, %v440
    %v443 = vadd.f32 %v434, %v440
    %v444 = vadd.f32 %v435, %v440
    %v445 = vadd.f32 %v436, %v440
    %v446 = vadd.f32 %v442, %v276
    %v447 = vadd.f32 %v443, %v277
    %v448 = vadd.f32 %v444, %v278
    %v449 = vadd.f32 %v445, %v279
    %v450 = vperm.slane %v25, 7
    %451 = vrot.lane.b32.xlu0 %v28, 64
    %v452 = vpop.permute.xlu0 %451
    %453 = vrot.lane.b32.xlu0 %v29, 64
    %v454 = vpop.permute.xlu0 %453
    %455 = vrot.lane.b32.xlu0 %v30, 64
    %v456 = vpop.permute.xlu0 %455
    %457 = vrot.lane.b32.xlu0 %v31, 64
    %v458 = vpop.permute.xlu0 %457
    %464 = vrot.lane.b32.xlu0 %v450, 64
    %v465 = vpop.permute.xlu0 %464
    %v468 = vsel %vm67, %v446, 0
    %v471 = vsel %vm67, %v447, 0
    %v474 = vsel %vm67, %v448, 0
    %v477 = vsel %vm67, %v449, 0
    %479 = vmatpush.msra.mxu0 0.0
    %480 = vmatpush.msra.mxu0 0.0
    %481 = vmatpush.msra.mxu0 0.0
    %482 = vmatpush.msra.mxu0 0.0
    %483 = vmatpush.msra.mxu0 0.0
    %484 = vmatpush.msra.mxu0 0.0
    %485 = vmatpush.msra.mxu0 0.0
    %486 = vmatpush.msra.mxu0 0.0
    %487 = vmatpush.msra.mxu0 0.0
    %488 = vmatpush.msra.mxu0 0.0
    %489 = vmatpush.msra.mxu0 0.0
    %490 = vmatpush.msra.mxu0 0.0
    %491 = vmatpush.msra.mxu0 %v458
    %492 = vmatpush.msra.mxu0 %v456
    %493 = vmatpush.msra.mxu0 %v454
    %494 = vmatpush.msra.mxu0 %v452
    %495 = vmatmul.f32.gmra.mxu0 %v468
    %v496 = vpop.f32.mrf.mxu0
    %v497 = vadd.f32 %v465, %v496
    %498 = vmatmul.f32.gmra.mxu0 %v471
    %v499 = vpop.f32.mrf.mxu0
    %v500 = vadd.f32 %v465, %v499
    %501 = vmatmul.f32.gmra.mxu0 %v474
    %v502 = vpop.f32.mrf.mxu0
    %v503 = vadd.f32 %v465, %v502
    %504 = vmatmul.f32.gmra.mxu0 %v477
    %v505 = vpop.f32.mrf.mxu0
    %v506 = vadd.f32 %v465, %v505
    %507 = vdwg.mxu0
    %v508 = vmax.f32 %v497, 0.0
    %v509 = vmax.f32 %v500, 0.0
    %v510 = vmax.f32 %v503, 0.0
    %v511 = vmax.f32 %v506, 0.0
    %512 = vmatpush.msra.mxu0 0.0
    %513 = vmatpush.msra.mxu0 0.0
    %514 = vmatpush.msra.mxu0 0.0
    %515 = vmatpush.msra.mxu0 0.0
    %516 = vmatpush.msra.mxu0 0.0
    %517 = vmatpush.msra.mxu0 0.0
    %518 = vmatpush.msra.mxu0 0.0
    %519 = vmatpush.msra.mxu0 0.0
    %520 = vmatpush.msra.mxu0 0.0
    %521 = vmatpush.msra.mxu0 0.0
    %522 = vmatpush.msra.mxu0 0.0
    %523 = vmatpush.msra.mxu0 0.0
    %524 = vmatpush.msra.mxu0 %v511
    %525 = vmatpush.msra.mxu0 %v510
    %526 = vmatpush.msra.mxu0 %v509
    %527 = vmatpush.msra.mxu0 %v508
    %528 = vmatmul.f32.gmra.mxu0 %v182
    %v529 = vpop.f32.mrf.mxu0
    %v530 = vadd.f32 0.0, %v529
    %531 = vdwg.mxu0
    %v532 = vmul.f32 %v508, %v508
    %v533 = vmul.f32 %v509, %v509
    %v534 = vmul.f32 %v510, %v510
    %v535 = vmul.f32 %v511, %v511
    %536 = vmatpush.msra.mxu0 0.0
    %537 = vmatpush.msra.mxu0 0.0
    %538 = vmatpush.msra.mxu0 0.0
    %539 = vmatpush.msra.mxu0 0.0
    %540 = vmatpush.msra.mxu0 0.0
    %541 = vmatpush.msra.mxu0 0.0
    %542 = vmatpush.msra.mxu0 0.0
    %543 = vmatpush.msra.mxu0 0.0
    %544 = vmatpush.msra.mxu0 0.0
    %545 = vmatpush.msra.mxu0 0.0
    %546 = vmatpush.msra.mxu0 0.0
    %547 = vmatpush.msra.mxu0 0.0
    %548 = vmatpush.msra.mxu0 %v535
    %549 = vmatpush.msra.mxu0 %v534
    %550 = vmatpush.msra.mxu0 %v533
    %551 = vmatpush.msra.mxu0 %v532
    %552 = vmatmul.f32.gmra.mxu0 %v182
    %v553 = vpop.f32.mrf.mxu0
    %v554 = vadd.f32 0.0, %v553
    %555 = vdwg.mxu0
    %v557 = vrot.slane %v530, 1
    %v559 = vadd.f32 %v530, %v557
    %v560 = vmul.f32 %v559, 0.5
    %v562 = vrot.slane %v554, 1
    %v564 = vadd.f32 %v554, %v562
    %v565 = vmul.f32 %v564, 0.5
    %v566 = vmul.f32 %v560, %v560
    %v567 = vsub.f32 %v565, %v566
    %v568 = vmax.f32 %v567, 0.0
    %v569 = vperm.slane %v560, 0
    %v570 = vsub.f32 %v508, %v569
    %v571 = vsub.f32 %v509, %v569
    %v572 = vsub.f32 %v510, %v569
    %v573 = vsub.f32 %v511, %v569
    %v574 = vadd.f32 %v568, 1e-05
    %v575 = vrsqrt.pop %v574
    %v576 = vmul.f32 %v575, %v574
    %v577 = vmul.f32 %v576, %v575
    %v578 = vmul.f32 0.5, %v577
    %v579 = vsub.f32 1.5, %v578
    %v580 = vmul.f32 %v575, %v579
    %vm581 = vweird.f32 %v574
    %vm582 = vweird.f32 %v575
    %vm583 = vmor %vm581, %vm582
    %v584 = vsel %vm583, %v575, %v580
    %v585 = vperm.slane %v584, 0
    %v586 = vmul.f32 %v570, %v585
    %v587 = vmul.f32 %v571, %v585
    %v588 = vmul.f32 %v572, %v585
    %v589 = vmul.f32 %v573, %v585
    %v590 = vperm.slane %v26, 0
    %592 = vrot.lane.b32.xlu0 %v590, 64
    %v593 = vpop.permute.xlu0 %592
    %v595 = vmul.f32 %v586, %v593
    %v596 = vmul.f32 %v587, %v593
    %v597 = vmul.f32 %v588, %v593
    %v598 = vmul.f32 %v589, %v593
    %v599 = vperm.slane %v26, 1
    %601 = vrot.lane.b32.xlu0 %v599, 64
    %v602 = vpop.permute.xlu0 %601
    %v604 = vadd.f32 %v595, %v602
    %v605 = vadd.f32 %v596, %v602
    %v606 = vadd.f32 %v597, %v602
    %v607 = vadd.f32 %v598, %v602
    %v608 = vadd.f32 %v604, %v446
    %v609 = vadd.f32 %v605, %v447
    %v610 = vadd.f32 %v606, %v448
    %v611 = vadd.f32 %v607, %v449
    %612 = vmatpush.msra.mxu0 0.0
    %613 = vmatpush.msra.mxu0 0.0
    %614 = vmatpush.msra.mxu0 0.0
    %615 = vmatpush.msra.mxu0 0.0
    %616 = vmatpush.msra.mxu0 0.0
    %617 = vmatpush.msra.mxu0 0.0
    %618 = vmatpush.msra.mxu0 0.0
    %619 = vmatpush.msra.mxu0 0.0
    %620 = vmatpush.msra.mxu0 0.0
    %621 = vmatpush.msra.mxu0 0.0
    %622 = vmatpush.msra.mxu0 0.0
    %623 = vmatpush.msra.mxu0 0.0
    %624 = vmatpush.msra.mxu0 %v611
    %625 = vmatpush.msra.mxu0 %v610
    %626 = vmatpush.msra.mxu0 %v609
    %627 = vmatpush.msra.mxu0 %v608
    %628 = vmatmul.f32.gmra.mxu0 %v182
    %v629 = vpop.f32.mrf.mxu0
    %v630 = vadd.f32 0.0, %v629
    %631 = vdwg.mxu0
    %v632 = vmul.f32 %v608, %v608
    %v633 = vmul.f32 %v609, %v609
    %v634 = vmul.f32 %v610, %v610
    %v635 = vmul.f32 %v611, %v611
    %636 = vmatpush.msra.mxu0 0.0
    %637 = vmatpush.msra.mxu0 0.0
    %638 = vmatpush.msra.mxu0 0.0
    %639 = vmatpush.msra.mxu0 0.0
    %640 = vmatpush.msra.mxu0 0.0
    %641 = vmatpush.msra.mxu0 0.0
    %642 = vmatpush.msra.mxu0 0.0
    %643 = vmatpush.msra.mxu0 0.0
    %644 = vmatpush.msra.mxu0 0.0
    %645 = vmatpush.msra.mxu0 0.0
    %646 = vmatpush.msra.mxu0 0.0
    %647 = vmatpush.msra.mxu0 0.0
    %648 = vmatpush.msra.mxu0 %v635
    %649 = vmatpush.msra.mxu0 %v634
    %650 = vmatpush.msra.mxu0 %v633
    %651 = vmatpush.msra.mxu0 %v632
    %652 = vmatmul.f32.gmra.mxu0 %v182
    %v653 = vpop.f32.mrf.mxu0
    %v654 = vadd.f32 0.0, %v653
    %655 = vdwg.mxu0
    %v656 = vmul.f32 %v630, %v630
    %v657 = vsub.f32 %v654, %v656
    %v658 = vmax.f32 %v657, 0.0
    %v659 = vadd.f32 %v658, 1e-12
    %v660 = vrsqrt.pop %v659
    %v661 = vmul.f32 %v660, %v659
    %v662 = vmul.f32 %v661, %v660
    %v663 = vmul.f32 0.5, %v662
    %v664 = vsub.f32 1.5, %v663
    %v665 = vmul.f32 %v660, %v664
    %v666 = vmul.f32 %v659, %v665
    %vm667 = vcmp.eq.f32.partialorder %v659, inf
    %v668 = vsel %vm667, %v659, %v666
    %vm669 = vcmp.eq.f32.partialorder %v659, 0.0
    %v670 = vand.u32 %v659, 2147483648
    %v671 = vsel %vm669, %v670, %v668
    %v672 = vsel %vm67, %v608, -inf
    %v673 = vsel %vm67, %v609, -inf
    %v674 = vmax.f32 %v672, %v673
    %v675 = vrot.slane %v674, 4
    %v676 = vmax.f32 %v674, %v675
    %v677 = vrot.slane %v676, 2
    %v678 = vmax.f32 %v676, %v677
    %v679 = vrot.slane %v678, 1
    %v680 = vmax.f32 %v678, %v679
    %v681 = vsel %vm67, %v608, inf
    %v682 = vsel %vm67, %v609, inf
    %v683 = vmin.f32 %v681, %v682
    %v684 = vrot.slane %v683, 4
    %v685 = vmin.f32 %v683, %v684
    %v686 = vrot.slane %v685, 2
    %v687 = vmin.f32 %v685, %v686
    %v688 = vrot.slane %v687, 1
    %v689 = vmin.f32 %v687, %v688
    %v690 = vsel %vm67, %v610, -inf
    %v691 = vsel %vm67, %v611, -inf
    %v692 = vmax.f32 %v690, %v691
    %v693 = vrot.slane %v692, 4
    %v694 = vmax.f32 %v692, %v693
    %v695 = vrot.slane %v694, 2
    %v696 = vmax.f32 %v694, %v695
    %v697 = vrot.slane %v696, 1
    %v698 = vmax.f32 %v696, %v697
    %v699 = vsel %vm67, %v610, inf
    %v700 = vsel %vm67, %v611, inf
    %v701 = vmin.f32 %v699, %v700
    %v702 = vrot.slane %v701, 4
    %v703 = vmin.f32 %v701, %v702
    %v704 = vrot.slane %v703, 2
    %v705 = vmin.f32 %v703, %v704
    %v706 = vrot.slane %v705, 1
    %v707 = vmin.f32 %v705, %v706
    %vm708 = vcmask 1040384
    %v709 = vsel %vm708, %v680, %v698
    %v710 = vsel %vm708, %v689, %v707
    %712 = vrot.lane.b32.xlu0 %v709, 32
    %v713 = vpop.permute.xlu0 %712
    %716 = vrot.lane.b32.xlu0 %v710, 64
    %v717 = vpop.permute.xlu0 %716
    %720 = vrot.lane.b32.xlu0 %v671, 96
    %v721 = vpop.permute.xlu0 %720
    %v723 = vsel %vm67, %v630, %v713
    %vm724 = vcmask 523264
    %v725 = vsel %vm724, %v723, %v717
    %vm726 = vcmask 785408
    %v727 = vsel %vm726, %v725, %v721
    %v728 = vmax.f32 %v727, 0.0
    %v729 = vld [vmem:[#allocation2] sm:$0xff]
    %v730 = vld [vmem:[#allocation2 + $0x8] sm:$0xff]
    %v731 = vld [vmem:[#allocation2 + $0x10] sm:$0xff]
    %v732 = vld [vmem:[#allocation2 + $0x18] sm:$0xff]
    %v733 = vld [vmem:[#allocation2 + $0x20] sm:$0xff]
    %v734 = vld [vmem:[#allocation2 + $0x28] sm:$0xff]
    %v735 = vld [vmem:[#allocation2 + $0x30] sm:$0xff]
    %v736 = vld [vmem:[#allocation2 + $0x38] sm:$0xff]
    %v737 = vld [vmem:[#allocation2 + $0x40] sm:$0xff]
    %v738 = vld [vmem:[#allocation2 + $0x48] sm:$0xff]
    %v739 = vld [vmem:[#allocation2 + $0x50] sm:$0xff]
    %v740 = vld [vmem:[#allocation2 + $0x58] sm:$0xff]
    %v741 = vperm.slane %v26, 2
    %743 = vrot.lane.b32.xlu0 %v741, 64
    %v744 = vpop.permute.xlu0 %743
    %746 = vmatpush.msra.mxu0 %v283
    %747 = vmatpush.msra.mxu0 %v282
    %748 = vmatpush.msra.mxu0 %v281
    %749 = vmatpush.msra.mxu0 %v280
    %750 = vmatpush.msra.mxu0 %v740
    %751 = vmatpush.msra.mxu0 %v739
    %752 = vmatpush.msra.mxu0 %v738
    %753 = vmatpush.msra.mxu0 %v737
    %754 = vmatpush.msra.mxu0 %v736
    %755 = vmatpush.msra.mxu0 %v735
    %756 = vmatpush.msra.mxu0 %v734
    %757 = vmatpush.msra.mxu0 %v733
    %758 = vmatpush.msra.mxu0 %v732
    %759 = vmatpush.msra.mxu0 %v731
    %760 = vmatpush.msra.mxu0 %v730
    %761 = vmatpush.msra.mxu0 %v729
    %762 = vmatmul.f32.gmra.mxu0 %v728
    %v763 = vpop.f32.mrf.mxu0
    %v764 = vadd.f32 %v744, %v763
    %765 = vdwg.mxu0
    %v766 = vmax.f32 %v764, 0.0
    %v767 = vld [vmem:[#allocation2 + $0x80] sm:$0xff]
    %v768 = vld [vmem:[#allocation2 + $0x88] sm:$0xff]
    %v769 = vld [vmem:[#allocation2 + $0x90] sm:$0xff]
    %v770 = vld [vmem:[#allocation2 + $0x98] sm:$0xff]
    %v771 = vld [vmem:[#allocation2 + $0xa0] sm:$0x1]
    %v772 = vperm.slane %v771, 0
    %v774 = vsel %vm67, %v766, 0
    %776 = vmatpush.msra.mxu0 0.0
    %777 = vmatpush.msra.mxu0 0.0
    %778 = vmatpush.msra.mxu0 0.0
    %779 = vmatpush.msra.mxu0 0.0
    %780 = vmatpush.msra.mxu0 0.0
    %781 = vmatpush.msra.mxu0 0.0
    %782 = vmatpush.msra.mxu0 0.0
    %783 = vmatpush.msra.mxu0 0.0
    %784 = vmatpush.msra.mxu0 0.0
    %785 = vmatpush.msra.mxu0 0.0
    %786 = vmatpush.msra.mxu0 0.0
    %787 = vmatpush.msra.mxu0 0.0
    %788 = vmatpush.msra.mxu0 %v770
    %789 = vmatpush.msra.mxu0 %v769
    %790 = vmatpush.msra.mxu0 %v768
    %791 = vmatpush.msra.mxu0 %v767
    %792 = vmatmul.f32.gmra.mxu0 %v774
    %v793 = vpop.f32.mrf.mxu0
    %v794 = vadd.f32 %v772, %v793
    %795 = vdwg.mxu0
    %796 = vst [vmem:[#allocation5] sm:$0x3] %v794
    // Predicated region
    $region10: #{tpu_custom_call.1} parent=1 // pred_check
      _
    $region11: #{tpu_custom_call.1} parent=1 // pred_check_branch
      %798 = sbr.rel (0) target = $region13
    $region12: #{tpu_custom_call.1} parent=1 // pred_region
      %800 = vsyncadd [#allocation4], 0
      %s802 = sshll.u32 [#allocation5], 4
      %s803 = int_to_ptr.vmem [resolvable:$true] %s802
      %s804 = sshll.u32 %s1, 4
      %s805 = int_to_ptr.hbm [resolvable:$true] %s804
      %807 = dma.vmem_to_hbm [thread:$0]  %s803, 32, %s805, [#allocation4]
    $region13: #{tpu_custom_call.1} parent=1 // pred_fallthru
      _
    // Predicated region
    $region14: #{tpu_custom_call.1} parent=1 // pred_check
      _
    $region15: #{tpu_custom_call.1} parent=1 // pred_check_branch
      %809 = sbr.rel (0) target = $region17
    $region16: #{tpu_custom_call.1} parent=1 // pred_region
      %811 = dma.done [#allocation4], 32
    $region17: #{tpu_custom_call.1} parent=1 // pred_fallthru
      _
    %812 = vsyncpa [#allocation3], 1
    %813 = vsyncpa [#allocation4], 1

</llo_original>
